<compile_context>
chip_gen: v5e
topology: v5e:2x2
jax: 0.10.0
libtpu: 0.0.40
codegen_flags: <defaults>
</compile_context>

<pallas_src>
import jax
import jax.numpy as jnp
from jax.experimental import pallas as pl
from jax.experimental.pallas import tpu as pltpu


def _round_up(v, m):
    return (v + m - 1) // m * m


# ----------------------------------------------------------------------------
# Fused kernel factory (static config closed over)
# ----------------------------------------------------------------------------
def _make_kernel(cin4, ni, nf, R_pad, BASE, DCOLS, down_offs, up_offs,
                 inv_cnt, eps, compute_dtype):
    def kernel(z_ref, wd_ref, wu_ref, mask_ref, out_ref,
               zs_buf, dpad_buf, ds_buf):
        # z_ref   : (cin4, ZCOLS)   f32  space-to-depth'd pad-1 input (flat pixels on lanes)
        # wd_ref  : (ni, 4*cin4)    cdt  K-stacked down-conv weight
        # wu_ref  : (4*nf, 9*ni)    cdt  block-sparse (phase x tap) up-conv weight
        # mask_ref: (1, R_pad)      f32  1.0 on valid flat pixels
        # out_ref : (4*nf, R_pad)   f32  BN-normalized up-conv output, phase-major rows
        # zs_buf  : (4*cin4, R_pad) f32  staged down-conv tap shifts (each shift done ONCE)
        # dpad_buf: (ni, DCOLS)     f32  relu(d) with 128-aligned zero margins
        # ds_buf  : (9*ni, R_pad)   f32  staged up-conv tap shifts (each shift done ONCE)
        mask = mask_ref[...]

        # LeakyReLU(0.2): applied once, on the un-duplicated input, in f32.
        z = z_ref[...]
        zl = jnp.where(z > 0, z, 0.2 * z)

        # Stage the 4 down-conv tap shifts once each, K-stacked on sublanes.
        for t, off in enumerate(down_offs):
            zs_buf[t * cin4:(t + 1) * cin4, :] = zl[:, off:off + R_pad]

        # Down conv: ONE matmul, K = 4*cin*4, operands in compute_dtype, f32 acc.
        d = jnp.dot(wd_ref[...], zs_buf[...].astype(compute_dtype),
                    preferred_element_type=jnp.float32)            # (ni, R_pad)

        # ReLU + validity mask into the 128-aligned interior of dpad_buf.
        # Zero only the two pad stripes; interior write is an aligned vst.
        dpad_buf[:, 0:BASE] = jnp.zeros((ni, BASE), jnp.float32)
        dpad_buf[:, BASE + R_pad:DCOLS] = jnp.zeros(
            (ni, DCOLS - BASE - R_pad), jnp.float32)
        dpad_buf[:, BASE:BASE + R_pad] = jnp.maximum(d, 0.0) * mask

        # Stage the 9 distinct conv-transpose tap shifts once each.
        for k, off in enumerate(up_offs):
            ds_buf[k * ni:(k + 1) * ni, :] = dpad_buf[:, BASE + off:BASE + off + R_pad]

        # Up conv: ONE block-sparse matmul produces all 4 sub-pixel phases.
        y = jnp.dot(wu_ref[...], ds_buf[...].astype(compute_dtype),
                    preferred_element_type=jnp.float32)            # (4*nf, R_pad)

        # Streamed BatchNorm2d (training-mode batch stats, gamma=1, beta=0):
        # store raw y, accumulate per-channel sums in f32, normalize in place.
        out_ref[...] = y
        ym = y * mask                                              # exclude pad columns
        s_rows = jnp.sum(ym, axis=1, keepdims=True)                # (4*nf, 1)
        ss_rows = jnp.sum(ym * y, axis=1, keepdims=True)           # (4*nf, 1)
        s_c = (s_rows[0:nf] + s_rows[nf:2 * nf]
               + s_rows[2 * nf:3 * nf] + s_rows[3 * nf:4 * nf])    # (nf, 1)
        ss_c = (ss_rows[0:nf] + ss_rows[nf:2 * nf]
                + ss_rows[2 * nf:3 * nf] + ss_rows[3 * nf:4 * nf])
        mean = s_c * inv_cnt
        var = jnp.maximum(ss_c * inv_cnt - mean * mean, 0.0)
        rstd = jax.lax.rsqrt(var + eps)
        mean_b = jnp.concatenate([mean, mean, mean, mean], axis=0)  # (4*nf, 1)
        rstd_b = jnp.concatenate([rstd, rstd, rstd, rstd], axis=0)
        out_ref[...] = (out_ref[...] - mean_b) * rstd_b

    return kernel


# ----------------------------------------------------------------------------
# UnetBlock (innermost) forward
# ----------------------------------------------------------------------------
def unet_block_innermost(x, w_down, w_up, compute_dtype=jnp.bfloat16):
    """x: (N, input_c, H, W) NCHW, H and W even.  Returns (N, input_c + nf, H, W)."""
    n, cin, h, w = x.shape
    ni = w_down.shape[0]
    nf = w_up.shape[1]
    assert h % 2 == 0 and w % 2 == 0
    ho, wo = h // 2, w // 2
    hz, wz = ho + 1, wo + 1            # 2x2-phase grid of the pad-1 input
    cin4 = cin * 4
    R = n * hz * wz                    # flat (n, a, b) pixel axis -> lane axis in-kernel
    R_pad = _round_up(R, 128)          # lane-dense flat pixel axis
    BASE = 128                         # 128-aligned start of the relu(d) interior
    DCOLS = _round_up(BASE + R_pad + wz + 1, 128)
    ZCOLS = _round_up(R_pad + wz + 1, 128)
    eps = 1e-5
    inv_cnt = 1.0 / float(n * h * w)   # BN averages over the true pixel count

    # ---------------- XLA prep (tiny, un-inflated tensors only) ----------------
    # Space-to-depth of the pad-1 input: z[(ci,ph,pw), n*hz*wz + a*wz + b]
    #   = xpad[n, ci, 2a+ph, 2b+pw].  Stride-2 conv becomes a 2x2 stride-1 conv.
    xpad = jnp.pad(x, ((0, 0), (0, 0), (1, 1), (1, 1)))
    z = xpad.reshape(n, cin, hz, 2, wz, 2).transpose(1, 3, 5, 0, 2, 4).reshape(cin4, R)
    z = jnp.pad(z, ((0, 0), (0, ZCOLS - R))).astype(jnp.float32)

    # Down-conv weight, K-stacked over the 4 (dh,dw) taps:
    #   wd[co, t*cin4 + (ci*4+ph*2+pw)] = w_down[co, ci, 2*dh+ph, 2*dw+pw], t = dh*2+dw
    wd = w_down.reshape(ni, cin, 2, 2, 2, 2).transpose(2, 4, 0, 1, 3, 5)
    wd = wd.reshape(4, ni, cin4).transpose(1, 0, 2).reshape(ni, 4 * cin4)
    wd = wd.astype(compute_dtype)
    down_offs = (0, 1, wz, wz + 1)     # flat offset of tap (dh, dw)

    # Up-conv block weight: rows = phase(p,q)*nf + out_ch, cols = tap(da,db)*ni + in_ch.
    #   y[:, 2a+p, 2b+q] += w_up[:, :, p+1-2*da, q+1-2*db]^T @ relu(d)[:, a+da, b+db]
    # Each phase uses only 4 of the 9 taps; unused blocks stay zero (block-sparse).
    offset_pairs = ((-1, -1), (-1, 0), (-1, 1), (0, -1), (0, 0),
                    (0, 1), (1, -1), (1, 0), (1, 1))
    up_offs = tuple(da * wz + db for da, db in offset_pairs)
    phases = ((0, 0), (0, 1), (1, 0), (1, 1))
    wu = jnp.zeros((4 * nf, 9 * ni), jnp.float32)
    for ph, (p, q) in enumerate(phases):
        for k, (da, db) in enumerate(offset_pairs):
            if da not in ((0, -1) if p == 0 else (0, 1)):
                continue
            if db not in ((0, -1) if q == 0 else (0, 1)):
                continue
            kh = p + 1 - 2 * da
            kw = q + 1 - 2 * db
            wu = wu.at[ph * nf:(ph + 1) * nf, k * ni:(k + 1) * ni].set(
                jnp.transpose(w_up[:, :, kh, kw]))
        # (da, db) outside the phase's set would index kh/kw outside [0,4); skipped.
    wu = wu.astype(compute_dtype)

    # Validity mask on the lane axis (flat pixel r valid iff r < R, a < ho, b < wo).
    r_idx = jnp.arange(R_pad, dtype=jnp.int32)
    t = r_idx % (hz * wz)
    mask = ((r_idx < R) & (t // wz < ho) & (t % wz < wo)).astype(jnp.float32)
    mask = mask.reshape(1, R_pad)

    kernel = _make_kernel(cin4, ni, nf, R_pad, BASE, DCOLS, down_offs, up_offs,
                          inv_cnt, eps, compute_dtype)
    vmem = pl.BlockSpec(memory_space=pltpu.MemorySpace.VMEM)
    itemsize = jnp.dtype(compute_dtype).itemsize
    flops = 2 * R_pad * (ni * 4 * cin4 + 4 * nf * 9 * ni)
    bytes_acc = 4 * (z.size + mask.size + 4 * nf * R_pad) + itemsize * (wd.size + wu.size)

    # TODO(synk): for real feature-map sizes, tile the flat R axis with a "parallel"
    # grid axis (2 TCs on v7x), budget tile sizes for v7x's 64 MiB VMEM via
    # pltpu.CompilerParams(vmem_limit_bytes=...), and accumulate the BN s/ss across
    # tiles in a persistent scratch with a pl.when finalize pass (exact batch stats).
    y_flat = pl.pallas_call(
        kernel,
        out_shape=jax.ShapeDtypeStruct((4 * nf, R_pad), jnp.float32),
        in_specs=[vmem, vmem, vmem, vmem],
        out_specs=vmem,
        scratch_shapes=[
            pltpu.VMEM((4 * cin4, R_pad), jnp.float32),   # K-stacked leaky-relu'd input
            pltpu.VMEM((ni, DCOLS), jnp.float32),          # relu(d) with aligned margins
            pltpu.VMEM((9 * ni, R_pad), jnp.float32),      # K-stacked relu(d) shifts
        ],
        cost_estimate=pl.CostEstimate(flops=flops, transcendentals=nf,
                                      bytes_accessed=bytes_acc),
    )(z, wd, wu, mask)

    # ---------------- XLA epilogue: sub-pixel interleave + skip concat -----------
    # TODO(synk): writing the NCHW-interleaved slab and the skip copy of x directly
    # from the kernel needs stride-2 lane scatter / output aliasing; for production
    # sizes, write y into a channel-offset slice of a preallocated output
    # (input_output_aliases) instead of re-copying x through this concat.
    y = y_flat[:, :R].reshape(2, 2, nf, n, hz, wz)[:, :, :, :, :ho, :wo]
    y = y.transpose(3, 2, 4, 0, 5, 1).reshape(n, nf, h, w)
    return jnp.concatenate([x, y], axis=1)


# ----------------------------------------------------------------------------
# Pure-XLA reference (for the numerical check)
# ----------------------------------------------------------------------------
def _reference(x, w_down, w_up):
    xl = jnp.where(x > 0, x, 0.2 * x)
    d = jax.lax.conv_general_dilated(
        xl, w_down, window_strides=(2, 2), padding=((1, 1), (1, 1)),
        dimension_numbers=("NCHW", "OIHW", "NCHW"))
    dr = jnp.maximum(d, 0.0)
    wt = jnp.transpose(w_up, (1, 0, 2, 3))[:, :, ::-1, ::-1]
    y = jax.lax.conv_general_dilated(
        dr, wt, window_strides=(1, 1), padding=((2, 2), (2, 2)),
        lhs_dilation=(2, 2), dimension_numbers=("NCHW", "OIHW", "NCHW"))
    mean = jnp.mean(y, axis=(0, 2, 3), keepdims=True)
    var = jnp.mean((y - mean) ** 2, axis=(0, 2, 3), keepdims=True)
    yn = (y - mean) * jax.lax.rsqrt(var + 1e-5)
    return jnp.concatenate([x, yn], axis=1)


if __name__ == "__main__":
    # Module config: innermost UnetBlock(nf=4, ni=8) -> input_c = nf = 4
    nf, ni = 4, 8
    input_c = nf
    n, h, w = 2, 16, 16

    key = jax.random.PRNGKey(0)
    kx, kd, ku = jax.random.split(key, 3)
    x = jax.random.normal(kx, (n, input_c, h, w), dtype=jnp.float32)
    # Conv2d weight: (out=ni, in=input_c, 4, 4); ConvTranspose2d: (in=ni, out=nf, 4, 4)
    w_down = 0.05 * jax.random.normal(kd, (ni, input_c, 4, 4), dtype=jnp.float32)
    w_up = 0.05 * jax.random.normal(ku, (ni, nf, 4, 4), dtype=jnp.float32)

    fwd = jax.jit(unet_block_innermost, static_argnames=("compute_dtype",))
    ref = _reference(x, w_down, w_up)

    # f32 MXU path: tight correctness check (catches any tap/phase/offset bug).
    out_f32 = fwd(x, w_down, w_up, compute_dtype=jnp.float32)
    jax.block_until_ready(out_f32)
    assert out_f32.shape == (n, input_c + nf, h, w), out_f32.shape
    err_f32 = float(jnp.max(jnp.abs(out_f32 - ref)))
    assert err_f32 < 1e-4, f"f32 max abs err vs reference: {err_f32}"

    # bf16 MXU path (default; v6e/v7x throughput): bf16-rounding-level tolerance.
    out_bf16 = fwd(x, w_down, w_up, compute_dtype=jnp.bfloat16)
    jax.block_until_ready(out_bf16)
    err_bf16 = float(jnp.max(jnp.abs(out_bf16 - ref)))
    assert err_bf16 < 1e-1, f"bf16 max abs err vs reference: {err_bf16}"

    print("KERNEL_OK")
</pallas_src>

<mosaic_0001>
module attributes {stable_mosaic.version = 11 : i64} {
  func.func @kernel(%arg0: memref<16x384xf32, #tpu.memory_space<vmem>>, %arg1: memref<8x64xf32, #tpu.memory_space<vmem>>, %arg2: memref<16x72xf32, #tpu.memory_space<vmem>>, %arg3: memref<1x256xf32, #tpu.memory_space<vmem>>, %arg4: memref<16x256xf32, #tpu.memory_space<vmem>>, %arg5: memref<64x256xf32, #tpu.memory_space<vmem>>, %arg6: memref<8x512xf32, #tpu.memory_space<vmem>>, %arg7: memref<72x256xf32, #tpu.memory_space<vmem>>) attributes {dimension_semantics = [], scalar_prefetch = 0 : i64, scratch_operands = 3 : i64, tpu.core_type = #tpu.core_type<tc>} {
    %c0 = arith.constant 0 : index
    %c0_0 = arith.constant 0 : index
    %0 = vector.load %arg3[%c0, %c0_0] : memref<1x256xf32, #tpu.memory_space<vmem>>, vector<1x256xf32>
    %c0_1 = arith.constant 0 : index
    %c0_2 = arith.constant 0 : index
    %1 = vector.load %arg0[%c0_1, %c0_2] : memref<16x384xf32, #tpu.memory_space<vmem>>, vector<16x384xf32>
    %cst = arith.constant 0.000000e+00 : f32
    %2 = vector.broadcast %cst : f32 to vector<16x384xf32>
    %3 = arith.cmpf ogt, %1, %2 : vector<16x384xf32>
    %cst_3 = arith.constant 2.000000e-01 : f32
    %4 = vector.broadcast %cst_3 : f32 to vector<16x384xf32>
    %5 = arith.mulf %4, %1 : vector<16x384xf32>
    %6 = arith.select %3, %1, %5 : vector<16x384xi1>, vector<16x384xf32>
    %7 = vector.extract_strided_slice %6 {offsets = [0, 0], sizes = [16, 256], strides = [1, 1]} : vector<16x384xf32> to vector<16x256xf32>
    %c0_4 = arith.constant 0 : index
    %c0_5 = arith.constant 0 : index
    %8 = vector.load %arg5[%c0_4, %c0_5] : memref<64x256xf32, #tpu.memory_space<vmem>>, vector<16x256xf32>
    tpu.vector_store %arg5[%c0_4, %c0_5], %7 {strides = array<i32>} : memref<64x256xf32, #tpu.memory_space<vmem>>, vector<16x256xf32>,
    %9 = vector.extract_strided_slice %6 {offsets = [0, 1], sizes = [16, 256], strides = [1, 1]} : vector<16x384xf32> to vector<16x256xf32>
    %c16 = arith.constant 16 : index
    %c0_6 = arith.constant 0 : index
    %10 = vector.load %arg5[%c16, %c0_6] : memref<64x256xf32, #tpu.memory_space<vmem>>, vector<16x256xf32>
    tpu.vector_store %arg5[%c16, %c0_6], %9 {strides = array<i32>} : memref<64x256xf32, #tpu.memory_space<vmem>>, vector<16x256xf32>,
    %11 = vector.extract_strided_slice %6 {offsets = [0, 9], sizes = [16, 256], strides = [1, 1]} : vector<16x384xf32> to vector<16x256xf32>
    %c32 = arith.constant 32 : index
    %c0_7 = arith.constant 0 : index
    %12 = vector.load %arg5[%c32, %c0_7] : memref<64x256xf32, #tpu.memory_space<vmem>>, vector<16x256xf32>
    tpu.vector_store %arg5[%c32, %c0_7], %11 {strides = array<i32>} : memref<64x256xf32, #tpu.memory_space<vmem>>, vector<16x256xf32>,
    %13 = vector.extract_strided_slice %6 {offsets = [0, 10], sizes = [16, 256], strides = [1, 1]} : vector<16x384xf32> to vector<16x256xf32>
    %c48 = arith.constant 48 : index
    %c0_8 = arith.constant 0 : index
    %14 = vector.load %arg5[%c48, %c0_8] : memref<64x256xf32, #tpu.memory_space<vmem>>, vector<16x256xf32>
    tpu.vector_store %arg5[%c48, %c0_8], %13 {strides = array<i32>} : memref<64x256xf32, #tpu.memory_space<vmem>>, vector<16x256xf32>,
    %c0_9 = arith.constant 0 : index
    %c0_10 = arith.constant 0 : index
    %15 = vector.load %arg1[%c0_9, %c0_10] : memref<8x64xf32, #tpu.memory_space<vmem>>, vector<8x64xf32>
    %c0_11 = arith.constant 0 : index
    %c0_12 = arith.constant 0 : index
    %16 = vector.load %arg5[%c0_11, %c0_12] : memref<64x256xf32, #tpu.memory_space<vmem>>, vector<64x256xf32>
    %cst_13 = arith.constant dense<0.000000e+00> : vector<8x256xf32>
    %17 = tpu.matmul %15, %16, %cst_13 {dimension_numbers = #tpu.dot_dimension_numbers<[1], [0], [0], [1], [0, 0, 1, 1], [], []>} : vector<8x64xf32>, vector<64x256xf32>, vector<8x256xf32> -> vector<8x256xf32>
    %cst_14 = arith.constant 0.000000e+00 : f32
    %18 = vector.broadcast %cst_14 : f32 to vector<8x128xf32>
    %c0_15 = arith.constant 0 : index
    %c0_16 = arith.constant 0 : index
    %19 = vector.load %arg6[%c0_15, %c0_16] : memref<8x512xf32, #tpu.memory_space<vmem>>, vector<8x128xf32>
    tpu.vector_store %arg6[%c0_15, %c0_16], %18 {strides = array<i32>} : memref<8x512xf32, #tpu.memory_space<vmem>>, vector<8x128xf32>,
    %cst_17 = arith.constant 0.000000e+00 : f32
    %20 = vector.broadcast %cst_17 : f32 to vector<8x128xf32>
    %c0_18 = arith.constant 0 : index
    %c384 = arith.constant 384 : index
    %21 = vector.load %arg6[%c0_18, %c384] : memref<8x512xf32, #tpu.memory_space<vmem>>, vector<8x128xf32>
    tpu.vector_store %arg6[%c0_18, %c384], %20 {strides = array<i32>} : memref<8x512xf32, #tpu.memory_space<vmem>>, vector<8x128xf32>,
    %cst_19 = arith.constant 0.000000e+00 : f32
    %22 = vector.broadcast %cst_19 : f32 to vector<8x256xf32>
    %23 = arith.maximumf %17, %22 : vector<8x256xf32>
    %24 = vector.broadcast %0 : vector<1x256xf32> to vector<8x256xf32>
    %25 = arith.mulf %23, %24 : vector<8x256xf32>
    %c0_20 = arith.constant 0 : index
    %c128 = arith.constant 128 : index
    %26 = vector.load %arg6[%c0_20, %c128] : memref<8x512xf32, #tpu.memory_space<vmem>>, vector<8x256xf32>
    tpu.vector_store %arg6[%c0_20, %c128], %25 {strides = array<i32>} : memref<8x512xf32, #tpu.memory_space<vmem>>, vector<8x256xf32>,
    %c0_21 = arith.constant 0 : index
    %c118 = arith.constant 118 : index
    %27 = vector.load %arg6[%c0_21, %c118] : memref<8x512xf32, #tpu.memory_space<vmem>>, vector<8x256xf32>
    %c0_22 = arith.constant 0 : index
    %c0_23 = arith.constant 0 : index
    %28 = vector.load %arg7[%c0_22, %c0_23] : memref<72x256xf32, #tpu.memory_space<vmem>>, vector<8x256xf32>
    tpu.vector_store %arg7[%c0_22, %c0_23], %27 {strides = array<i32>} : memref<72x256xf32, #tpu.memory_space<vmem>>, vector<8x256xf32>,
    %c0_24 = arith.constant 0 : index
    %c119 = arith.constant 119 : index
    %29 = vector.load %arg6[%c0_24, %c119] : memref<8x512xf32, #tpu.memory_space<vmem>>, vector<8x256xf32>
    %c8 = arith.constant 8 : index
    %c0_25 = arith.constant 0 : index
    %30 = vector.load %arg7[%c8, %c0_25] : memref<72x256xf32, #tpu.memory_space<vmem>>, vector<8x256xf32>
    tpu.vector_store %arg7[%c8, %c0_25], %29 {strides = array<i32>} : memref<72x256xf32, #tpu.memory_space<vmem>>, vector<8x256xf32>,
    %c0_26 = arith.constant 0 : index
    %c120 = arith.constant 120 : index
    %31 = vector.load %arg6[%c0_26, %c120] : memref<8x512xf32, #tpu.memory_space<vmem>>, vector<8x256xf32>
    %c16_27 = arith.constant 16 : index
    %c0_28 = arith.constant 0 : index
    %32 = vector.load %arg7[%c16_27, %c0_28] : memref<72x256xf32, #tpu.memory_space<vmem>>, vector<8x256xf32>
    tpu.vector_store %arg7[%c16_27, %c0_28], %31 {strides = array<i32>} : memref<72x256xf32, #tpu.memory_space<vmem>>, vector<8x256xf32>,
    %c0_29 = arith.constant 0 : index
    %c127 = arith.constant 127 : index
    %33 = vector.load %arg6[%c0_29, %c127] : memref<8x512xf32, #tpu.memory_space<vmem>>, vector<8x256xf32>
    %c24 = arith.constant 24 : index
    %c0_30 = arith.constant 0 : index
    %34 = vector.load %arg7[%c24, %c0_30] : memref<72x256xf32, #tpu.memory_space<vmem>>, vector<8x256xf32>
    tpu.vector_store %arg7[%c24, %c0_30], %33 {strides = array<i32>} : memref<72x256xf32, #tpu.memory_space<vmem>>, vector<8x256xf32>,
    %c0_31 = arith.constant 0 : index
    %c128_32 = arith.constant 128 : index
    %35 = vector.load %arg6[%c0_31, %c128_32] : memref<8x512xf32, #tpu.memory_space<vmem>>, vector<8x256xf32>
    %c32_33 = arith.constant 32 : index
    %c0_34 = arith.constant 0 : index
    %36 = vector.load %arg7[%c32_33, %c0_34] : memref<72x256xf32, #tpu.memory_space<vmem>>, vector<8x256xf32>
    tpu.vector_store %arg7[%c32_33, %c0_34], %35 {strides = array<i32>} : memref<72x256xf32, #tpu.memory_space<vmem>>, vector<8x256xf32>,
    %c0_35 = arith.constant 0 : index
    %c129 = arith.constant 129 : index
    %37 = vector.load %arg6[%c0_35, %c129] : memref<8x512xf32, #tpu.memory_space<vmem>>, vector<8x256xf32>
    %c40 = arith.constant 40 : index
    %c0_36 = arith.constant 0 : index
    %38 = vector.load %arg7[%c40, %c0_36] : memref<72x256xf32, #tpu.memory_space<vmem>>, vector<8x256xf32>
    tpu.vector_store %arg7[%c40, %c0_36], %37 {strides = array<i32>} : memref<72x256xf32, #tpu.memory_space<vmem>>, vector<8x256xf32>,
    %c0_37 = arith.constant 0 : index
    %c136 = arith.constant 136 : index
    %39 = vector.load %arg6[%c0_37, %c136] : memref<8x512xf32, #tpu.memory_space<vmem>>, vector<8x256xf32>
    %c48_38 = arith.constant 48 : index
    %c0_39 = arith.constant 0 : index
    %40 = vector.load %arg7[%c48_38, %c0_39] : memref<72x256xf32, #tpu.memory_space<vmem>>, vector<8x256xf32>
    tpu.vector_store %arg7[%c48_38, %c0_39], %39 {strides = array<i32>} : memref<72x256xf32, #tpu.memory_space<vmem>>, vector<8x256xf32>,
    %c0_40 = arith.constant 0 : index
    %c137 = arith.constant 137 : index
    %41 = vector.load %arg6[%c0_40, %c137] : memref<8x512xf32, #tpu.memory_space<vmem>>, vector<8x256xf32>
    %c56 = arith.constant 56 : index
    %c0_41 = arith.constant 0 : index
    %42 = vector.load %arg7[%c56, %c0_41] : memref<72x256xf32, #tpu.memory_space<vmem>>, vector<8x256xf32>
    tpu.vector_store %arg7[%c56, %c0_41], %41 {strides = array<i32>} : memref<72x256xf32, #tpu.memory_space<vmem>>, vector<8x256xf32>,
    %c0_42 = arith.constant 0 : index
    %c138 = arith.constant 138 : index
    %43 = vector.load %arg6[%c0_42, %c138] : memref<8x512xf32, #tpu.memory_space<vmem>>, vector<8x256xf32>
    %c64 = arith.constant 64 : index
    %c0_43 = arith.constant 0 : index
    %44 = vector.load %arg7[%c64, %c0_43] : memref<72x256xf32, #tpu.memory_space<vmem>>, vector<8x256xf32>
    tpu.vector_store %arg7[%c64, %c0_43], %43 {strides = array<i32>} : memref<72x256xf32, #tpu.memory_space<vmem>>, vector<8x256xf32>,
    %c0_44 = arith.constant 0 : index
    %c0_45 = arith.constant 0 : index
    %45 = vector.load %arg2[%c0_44, %c0_45] : memref<16x72xf32, #tpu.memory_space<vmem>>, vector<16x72xf32>
    %c0_46 = arith.constant 0 : index
    %c0_47 = arith.constant 0 : index
    %46 = vector.load %arg7[%c0_46, %c0_47] : memref<72x256xf32, #tpu.memory_space<vmem>>, vector<72x256xf32>
    %cst_48 = arith.constant dense<0.000000e+00> : vector<16x256xf32>
    %47 = tpu.matmul %45, %46, %cst_48 {dimension_numbers = #tpu.dot_dimension_numbers<[1], [0], [0], [1], [0, 0, 1, 1], [], []>} : vector<16x72xf32>, vector<72x256xf32>, vector<16x256xf32> -> vector<16x256xf32>
    %c0_49 = arith.constant 0 : index
    %c0_50 = arith.constant 0 : index
    %48 = vector.load %arg4[%c0_49, %c0_50] : memref<16x256xf32, #tpu.memory_space<vmem>>, vector<16x256xf32>
    tpu.vector_store %arg4[%c0_49, %c0_50], %47 {strides = array<i32>} : memref<16x256xf32, #tpu.memory_space<vmem>>, vector<16x256xf32>,
    %49 = vector.broadcast %0 : vector<1x256xf32> to vector<16x256xf32>
    %50 = arith.mulf %47, %49 : vector<16x256xf32>
    %cst_51 = arith.constant dense<0.000000e+00> : vector<16xf32>
    %51 = vector.multi_reduction <add>, %50, %cst_51 [1] : vector<16x256xf32> to vector<16xf32>
    %52 = vector.shape_cast %51 : vector<16xf32> to vector<16x1xf32>
    %53 = arith.mulf %50, %47 : vector<16x256xf32>
    %cst_52 = arith.constant dense<0.000000e+00> : vector<16xf32>
    %54 = vector.multi_reduction <add>, %53, %cst_52 [1] : vector<16x256xf32> to vector<16xf32>
    %55 = vector.shape_cast %54 : vector<16xf32> to vector<16x1xf32>
    %56 = vector.extract_strided_slice %52 {offsets = [0, 0], sizes = [4, 1], strides = [1, 1]} : vector<16x1xf32> to vector<4x1xf32>
    %57 = vector.extract_strided_slice %52 {offsets = [4, 0], sizes = [4, 1], strides = [1, 1]} : vector<16x1xf32> to vector<4x1xf32>
    %58 = arith.addf %56, %57 : vector<4x1xf32>
    %59 = vector.extract_strided_slice %52 {offsets = [8, 0], sizes = [4, 1], strides = [1, 1]} : vector<16x1xf32> to vector<4x1xf32>
    %60 = arith.addf %58, %59 : vector<4x1xf32>
    %61 = vector.extract_strided_slice %52 {offsets = [12, 0], sizes = [4, 1], strides = [1, 1]} : vector<16x1xf32> to vector<4x1xf32>
    %62 = arith.addf %60, %61 : vector<4x1xf32>
    %63 = vector.extract_strided_slice %55 {offsets = [0, 0], sizes = [4, 1], strides = [1, 1]} : vector<16x1xf32> to vector<4x1xf32>
    %64 = vector.extract_strided_slice %55 {offsets = [4, 0], sizes = [4, 1], strides = [1, 1]} : vector<16x1xf32> to vector<4x1xf32>
    %65 = arith.addf %63, %64 : vector<4x1xf32>
    %66 = vector.extract_strided_slice %55 {offsets = [8, 0], sizes = [4, 1], strides = [1, 1]} : vector<16x1xf32> to vector<4x1xf32>
    %67 = arith.addf %65, %66 : vector<4x1xf32>
    %68 = vector.extract_strided_slice %55 {offsets = [12, 0], sizes = [4, 1], strides = [1, 1]} : vector<16x1xf32> to vector<4x1xf32>
    %69 = arith.addf %67, %68 : vector<4x1xf32>
    %cst_53 = arith.constant 0.001953125 : f32
    %70 = vector.broadcast %cst_53 : f32 to vector<4x1xf32>
    %71 = arith.mulf %62, %70 : vector<4x1xf32>
    %cst_54 = arith.constant 0.001953125 : f32
    %72 = vector.broadcast %cst_54 : f32 to vector<4x1xf32>
    %73 = arith.mulf %69, %72 : vector<4x1xf32>
    %74 = arith.mulf %71, %71 : vector<4x1xf32>
    %75 = arith.subf %73, %74 : vector<4x1xf32>
    %cst_55 = arith.constant 0.000000e+00 : f32
    %76 = vector.broadcast %cst_55 : f32 to vector<4x1xf32>
    %77 = arith.maximumf %75, %76 : vector<4x1xf32>
    %cst_56 = arith.constant 9.99999974E-6 : f32
    %78 = vector.broadcast %cst_56 : f32 to vector<4x1xf32>
    %79 = arith.addf %77, %78 : vector<4x1xf32>
    %80 = math.rsqrt %79 : vector<4x1xf32>
    %81 = tpu.concatenate %71, %71, %71, %71 in 0 : vector<4x1xf32>, vector<4x1xf32>, vector<4x1xf32>, vector<4x1xf32> -> vector<16x1xf32>
    %82 = tpu.concatenate %80, %80, %80, %80 in 0 : vector<4x1xf32>, vector<4x1xf32>, vector<4x1xf32>, vector<4x1xf32> -> vector<16x1xf32>
    %c0_57 = arith.constant 0 : index
    %c0_58 = arith.constant 0 : index
    %83 = vector.load %arg4[%c0_57, %c0_58] : memref<16x256xf32, #tpu.memory_space<vmem>>, vector<16x256xf32>
    %84 = vector.broadcast %81 : vector<16x1xf32> to vector<16x256xf32>
    %85 = arith.subf %83, %84 : vector<16x256xf32>
    %86 = vector.broadcast %82 : vector<16x1xf32> to vector<16x256xf32>
    %87 = arith.mulf %85, %86 : vector<16x256xf32>
    %c0_59 = arith.constant 0 : index
    %c0_60 = arith.constant 0 : index
    %88 = vector.load %arg4[%c0_59, %c0_60] : memref<16x256xf32, #tpu.memory_space<vmem>>, vector<16x256xf32>
    tpu.vector_store %arg4[%c0_59, %c0_60], %87 {strides = array<i32>} : memref<16x256xf32, #tpu.memory_space<vmem>>, vector<16x256xf32>,
    return
  }
}

</mosaic_0001>

<llo_original>
// kernel: unet_block_innermost.1
$region0: #{unet_block_innermost.1}
  #allocation0 [shape = 'u32[]', space=smem, size = 0x4, offset = 0x4, fixed_abs, tag = 'smem constant byte address 0x4 - core index']
  #allocation1 [shape = 'u32[72,128]{1,0:T(1,128)}', space=vmem, size = 0x9000, scoped, tag = 'internal scratch']
  #allocation2 [shape = 'f32[64,256]{1,0:T(8,128)}', space=vmem, size = 0x10000, scoped, tag = 'scratch operand']
  #allocation3 [shape = 'f32[8,512]{1,0:T(8,128)}', space=vmem, size = 0x4000, scoped, tag = 'scratch operand']
  #allocation4 [shape = 'f32[72,256]{1,0:T(8,128)}', space=vmem, size = 0x12000, scoped, tag = 'scratch operand']
  %s0 = inlined_call_operand.vmem [shape: f32[16,384], index: 0, kind: input, shape index: {}]
  %s1 = inlined_call_operand.vmem [shape: f32[8,64], index: 1, kind: input, shape index: {}]
  %s2 = inlined_call_operand.vmem [shape: f32[16,72], index: 2, kind: input, shape index: {}]
  %s3 = inlined_call_operand.vmem [shape: f32[1,256], index: 3, kind: input, shape index: {}]
  %s4 = inlined_call_operand.vmem [shape: f32[16,256], index: 4, kind: output, shape index: {}]
  %s5 = sld [smem:[#allocation0]]
  $region26: #{unet_block_innermost.1} parent=0
    _
  %s7 = ssub.s32 1, %s5
  %s8 = scalar_select 0, %s7, %s5
  // Predicated region
  $region2: #{unet_block_innermost.1} parent=0 // pred_check
    _
  $region3: #{unet_block_innermost.1} parent=0 // pred_check_branch
    %10 = sbr.rel (0) target = $region5
  $region4: #{unet_block_innermost.1} parent=0 // pred_region
    _
  $region5: #{unet_block_innermost.1} parent=0 // pred_fallthru
    _
  // Predicated region
  $region6: #{unet_block_innermost.1} parent=0 // pred_check
    _
  $region7: #{unet_block_innermost.1} parent=0 // pred_check_branch
    %12 = sbr.rel (0) target = $region9
  $region8: #{unet_block_innermost.1} parent=0 // pred_region
    _
  $region9: #{unet_block_innermost.1} parent=0 // pred_fallthru
    _
  // Predicated region
  $region10: #{unet_block_innermost.1} parent=0 // pred_check
    _
  $region11: #{unet_block_innermost.1} parent=0 // pred_check_branch
    %14 = sbr.rel (0) target = $region13
  $region12: #{unet_block_innermost.1} parent=0 // pred_region
    _
  $region13: #{unet_block_innermost.1} parent=0 // pred_fallthru
    _
  // Predicated region
  $region14: #{unet_block_innermost.1} parent=0 // pred_check
    _
  $region15: #{unet_block_innermost.1} parent=0 // pred_check_branch
    %16 = sbr.rel (0) target = $region17
  $region16: #{unet_block_innermost.1} parent=0 // pred_region
    _
  $region17: #{unet_block_innermost.1} parent=0 // pred_fallthru
    _
  %v17 = vld [vmem:[%s3] sm:$0x3]
  %v18 = vld [vmem:[%s0] sm:$0xff]
  %v19 = vld [vmem:[%s0 + $0x8] sm:$0xff]
  %v20 = vld [vmem:[%s0 + $0x10] sm:$0xff]
  %v21 = vld [vmem:[%s0 + $0x18] sm:$0xff]
  %v22 = vld [vmem:[%s0 + $0x20] sm:$0xff]
  %v23 = vld [vmem:[%s0 + $0x28] sm:$0xff]
  %vm24 = vcmp.gt.f32.partialorder %v18, 0.0
  %vm25 = vcmp.gt.f32.partialorder %v19, 0.0
  %vm26 = vcmp.gt.f32.partialorder %v20, 0.0
  %vm27 = vcmp.gt.f32.partialorder %v21, 0.0
  %vm28 = vcmp.gt.f32.partialorder %v22, 0.0
  %vm29 = vcmp.gt.f32.partialorder %v23, 0.0
  %v30 = vmul.f32 %v18, 0.2
  %v31 = vmul.f32 %v19, 0.2
  %v32 = vmul.f32 %v20, 0.2
  %v33 = vmul.f32 %v21, 0.2
  %v34 = vmul.f32 %v22, 0.2
  %v35 = vmul.f32 %v23, 0.2
  %v36 = vsel %vm24, %v18, %v30
  %v37 = vsel %vm25, %v19, %v31
  %v38 = vsel %vm26, %v20, %v32
  %v39 = vsel %vm27, %v21, %v33
  %v40 = vsel %vm28, %v22, %v34
  %v41 = vsel %vm29, %v23, %v35
  %42 = vst [vmem:[#allocation2] sm:$0xff] %v36
  %43 = vst [vmem:[#allocation2 + $0x8] sm:$0xff] %v37
  %44 = vst [vmem:[#allocation2 + $0x10] sm:$0xff] %v39
  %45 = vst [vmem:[#allocation2 + $0x18] sm:$0xff] %v40
  %52 = vrot.lane.b32.xlu0 %v36, 127
  %v53 = vpop.permute.xlu0 %52
  %54 = vrot.lane.b32.xlu0 %v37, 127
  %v55 = vpop.permute.xlu0 %54
  %56 = vrot.lane.b32.xlu0 %v38, 127
  %v57 = vpop.permute.xlu0 %56
  %58 = vrot.lane.b32.xlu0 %v39, 127
  %v59 = vpop.permute.xlu0 %58
  %60 = vrot.lane.b32.xlu0 %v40, 127
  %v61 = vpop.permute.xlu0 %60
  %62 = vrot.lane.b32.xlu0 %v41, 127
  %v63 = vpop.permute.xlu0 %62
  %vm64 = vcmask 1039360
  %v65 = vsel %vm64, %v53, %v55
  %v66 = vsel %vm64, %v55, %v57
  %v67 = vsel %vm64, %v59, %v61
  %v68 = vsel %vm64, %v61, %v63
  %73 = vst [vmem:[#allocation2 + $0x20] sm:$0xff] %v65
  %74 = vst [vmem:[#allocation2 + $0x28] sm:$0xff] %v66
  %75 = vst [vmem:[#allocation2 + $0x30] sm:$0xff] %v67
  %76 = vst [vmem:[#allocation2 + $0x38] sm:$0xff] %v68
  %77 = vrot.lane.b32.xlu0 %v36, 119
  %v78 = vpop.permute.xlu0 %77
  %79 = vrot.lane.b32.xlu0 %v37, 119
  %v80 = vpop.permute.xlu0 %79
  %81 = vrot.lane.b32.xlu0 %v38, 119
  %v82 = vpop.permute.xlu0 %81
  %83 = vrot.lane.b32.xlu0 %v39, 119
  %v84 = vpop.permute.xlu0 %83
  %85 = vrot.lane.b32.xlu0 %v40, 119
  %v86 = vpop.permute.xlu0 %85
  %87 = vrot.lane.b32.xlu0 %v41, 119
  %v88 = vpop.permute.xlu0 %87
  %vm89 = vcmask 973824
  %v90 = vsel %vm89, %v78, %v80
  %v91 = vsel %vm89, %v80, %v82
  %v92 = vsel %vm89, %v84, %v86
  %v93 = vsel %vm89, %v86, %v88
  %98 = vst [vmem:[#allocation2 + $0x40] sm:$0xff] %v90
  %99 = vst [vmem:[#allocation2 + $0x48] sm:$0xff] %v91
  %100 = vst [vmem:[#allocation2 + $0x50] sm:$0xff] %v92
  %101 = vst [vmem:[#allocation2 + $0x58] sm:$0xff] %v93
  %102 = vrot.lane.b32.xlu0 %v36, 118
  %v103 = vpop.permute.xlu0 %102
  %104 = vrot.lane.b32.xlu0 %v37, 118
  %v105 = vpop.permute.xlu0 %104
  %106 = vrot.lane.b32.xlu0 %v38, 118
  %v107 = vpop.permute.xlu0 %106
  %108 = vrot.lane.b32.xlu0 %v39, 118
  %v109 = vpop.permute.xlu0 %108
  %110 = vrot.lane.b32.xlu0 %v40, 118
  %v111 = vpop.permute.xlu0 %110
  %112 = vrot.lane.b32.xlu0 %v41, 118
  %v113 = vpop.permute.xlu0 %112
  %vm114 = vcmask 965632
  %v115 = vsel %vm114, %v103, %v105
  %v116 = vsel %vm114, %v105, %v107
  %v117 = vsel %vm114, %v109, %v111
  %v118 = vsel %vm114, %v111, %v113
  %123 = vst [vmem:[#allocation2 + $0x60] sm:$0xff] %v115
  %124 = vst [vmem:[#allocation2 + $0x68] sm:$0xff] %v116
  %125 = vst [vmem:[#allocation2 + $0x70] sm:$0xff] %v117
  %126 = vst [vmem:[#allocation2 + $0x78] sm:$0xff] %v118
  %v127 = vld [vmem:[%s1] sm:$0xff]
  %v128 = vld [vmem:[#allocation2] sm:$0xff]
  %v129 = vld [vmem:[#allocation2 + $0x8] sm:$0xff]
  %v130 = vld [vmem:[#allocation2 + $0x10] sm:$0xff]
  %v131 = vld [vmem:[#allocation2 + $0x18] sm:$0xff]
  %v132 = vld [vmem:[#allocation2 + $0x20] sm:$0xff]
  %v133 = vld [vmem:[#allocation2 + $0x28] sm:$0xff]
  %v134 = vld [vmem:[#allocation2 + $0x30] sm:$0xff]
  %v135 = vld [vmem:[#allocation2 + $0x38] sm:$0xff]
  %v136 = vld [vmem:[#allocation2 + $0x40] sm:$0xff]
  %v137 = vld [vmem:[#allocation2 + $0x48] sm:$0xff]
  %v138 = vld [vmem:[#allocation2 + $0x50] sm:$0xff]
  %v139 = vld [vmem:[#allocation2 + $0x58] sm:$0xff]
  %v140 = vld [vmem:[#allocation2 + $0x60] sm:$0xff]
  %v141 = vld [vmem:[#allocation2 + $0x68] sm:$0xff]
  %v142 = vld [vmem:[#allocation2 + $0x70] sm:$0xff]
  %v143 = vld [vmem:[#allocation2 + $0x78] sm:$0xff]
  %vm144 = vcmask 523264
  %v146 = vsel %vm144, %v127, 0
  %148 = vmatpush.msra.mxu0 0.0
  %149 = vmatpush.msra.mxu0 0.0
  %150 = vmatpush.msra.mxu0 0.0
  %151 = vmatpush.msra.mxu0 0.0
  %152 = vmatpush.msra.mxu0 0.0
  %153 = vmatpush.msra.mxu0 0.0
  %154 = vmatpush.msra.mxu0 0.0
  %155 = vmatpush.msra.mxu0 0.0
  %156 = vmatpush.msra.mxu0 %v142
  %157 = vmatpush.msra.mxu0 %v140
  %158 = vmatpush.msra.mxu0 %v138
  %159 = vmatpush.msra.mxu0 %v136
  %160 = vmatpush.msra.mxu0 %v134
  %161 = vmatpush.msra.mxu0 %v132
  %162 = vmatpush.msra.mxu0 %v130
  %163 = vmatpush.msra.mxu0 %v128
  %164 = vmatmul.f32.gmra.mxu0 %v146
  %v165 = vpop.f32.mrf.mxu0
  %v166 = vadd.f32 0.0, %v165
  %167 = vdwg.mxu0
  %168 = vmatpush.msra.mxu0 0.0
  %169 = vmatpush.msra.mxu0 0.0
  %170 = vmatpush.msra.mxu0 0.0
  %171 = vmatpush.msra.mxu0 0.0
  %172 = vmatpush.msra.mxu0 0.0
  %173 = vmatpush.msra.mxu0 0.0
  %174 = vmatpush.msra.mxu0 0.0
  %175 = vmatpush.msra.mxu0 0.0
  %176 = vmatpush.msra.mxu0 %v143
  %177 = vmatpush.msra.mxu0 %v141
  %178 = vmatpush.msra.mxu0 %v139
  %179 = vmatpush.msra.mxu0 %v137
  %180 = vmatpush.msra.mxu0 %v135
  %181 = vmatpush.msra.mxu0 %v133
  %182 = vmatpush.msra.mxu0 %v131
  %183 = vmatpush.msra.mxu0 %v129
  %184 = vmatmul.f32.gmra.mxu0 %v146
  %v185 = vpop.f32.mrf.mxu0
  %v186 = vadd.f32 0.0, %v185
  %187 = vdwg.mxu0
  %188 = vst [vmem:[#allocation3] sm:$0xff] 0.0
  %189 = vst [vmem:[#allocation3 + $0x18] sm:$0xff] 0.0
  %v190 = vmax.f32 %v166, 0.0
  %v191 = vmax.f32 %v186, 0.0
  %v193 = vperm.slane %v17, 0
  %v194 = vperm.slane %v17, 1
  %v197 = vmul.f32 %v190, %v193
  %v198 = vmul.f32 %v191, %v194
  %199 = vst [vmem:[#allocation3 + $0x8] sm:$0xff] %v197
  %200 = vst [vmem:[#allocation3 + $0x10] sm:$0xff] %v198
  %v201 = vld [vmem:[#allocation3] sm:$0xff]
  %v202 = vld [vmem:[#allocation3 + $0x8] sm:$0xff]
  %v203 = vld [vmem:[#allocation3 + $0x10] sm:$0xff]
  %207 = vrot.lane.b32.xlu0 %v201, 10
  %v208 = vpop.permute.xlu0 %207
  %209 = vrot.lane.b32.xlu0 %v202, 10
  %v210 = vpop.permute.xlu0 %209
  %211 = vrot.lane.b32.xlu0 %v203, 10
  %v212 = vpop.permute.xlu0 %211
  %vm213 = vcmask 80896
  %v214 = vsel %vm213, %v208, %v210
  %v215 = vsel %vm213, %v210, %v212
  %218 = vst [vmem:[#allocation4] sm:$0xff] %v214
  %219 = vst [vmem:[#allocation4 + $0x8] sm:$0xff] %v215
  %v220 = vld [vmem:[#allocation3] sm:$0xff]
  %v221 = vld [vmem:[#allocation3 + $0x8] sm:$0xff]
  %v222 = vld [vmem:[#allocation3 + $0x10] sm:$0xff]
  %226 = vrot.lane.b32.xlu0 %v220, 9
  %v227 = vpop.permute.xlu0 %226
  %228 = vrot.lane.b32.xlu0 %v221, 9
  %v229 = vpop.permute.xlu0 %228
  %230 = vrot.lane.b32.xlu0 %v222, 9
  %v231 = vpop.permute.xlu0 %230
  %vm232 = vcmask 72704
  %v233 = vsel %vm232, %v227, %v229
  %v234 = vsel %vm232, %v229, %v231
  %237 = vst [vmem:[#allocation4 + $0x10] sm:$0xff] %v233
  %238 = vst [vmem:[#allocation4 + $0x18] sm:$0xff] %v234
  %v239 = vld [vmem:[#allocation3] sm:$0xff]
  %v240 = vld [vmem:[#allocation3 + $0x8] sm:$0xff]
  %v241 = vld [vmem:[#allocation3 + $0x10] sm:$0xff]
  %245 = vrot.lane.b32.xlu0 %v239, 8
  %v246 = vpop.permute.xlu0 %245
  %247 = vrot.lane.b32.xlu0 %v240, 8
  %v248 = vpop.permute.xlu0 %247
  %249 = vrot.lane.b32.xlu0 %v241, 8
  %v250 = vpop.permute.xlu0 %249
  %vm251 = vcmask 64512
  %v252 = vsel %vm251, %v246, %v248
  %v253 = vsel %vm251, %v248, %v250
  %256 = vst [vmem:[#allocation4 + $0x20] sm:$0xff] %v252
  %257 = vst [vmem:[#allocation4 + $0x28] sm:$0xff] %v253
  %v258 = vld [vmem:[#allocation3] sm:$0xff]
  %v259 = vld [vmem:[#allocation3 + $0x8] sm:$0xff]
  %v260 = vld [vmem:[#allocation3 + $0x10] sm:$0xff]
  %264 = vrot.lane.b32.xlu0 %v258, 1
  %v265 = vpop.permute.xlu0 %264
  %266 = vrot.lane.b32.xlu0 %v259, 1
  %v267 = vpop.permute.xlu0 %266
  %268 = vrot.lane.b32.xlu0 %v260, 1
  %v269 = vpop.permute.xlu0 %268
  %vm270 = vcmask 7168
  %v271 = vsel %vm270, %v265, %v267
  %v272 = vsel %vm270, %v267, %v269
  %275 = vst [vmem:[#allocation4 + $0x30] sm:$0xff] %v271
  %276 = vst [vmem:[#allocation4 + $0x38] sm:$0xff] %v272
  %v277 = vld [vmem:[#allocation3 + $0x8] sm:$0xff]
  %v278 = vld [vmem:[#allocation3 + $0x10] sm:$0xff]
  %279 = vst [vmem:[#allocation4 + $0x40] sm:$0xff] %v277
  %280 = vst [vmem:[#allocation4 + $0x48] sm:$0xff] %v278
  %v281 = vld [vmem:[#allocation3 + $0x8] sm:$0xff]
  %v282 = vld [vmem:[#allocation3 + $0x10] sm:$0xff]
  %v283 = vld [vmem:[#allocation3 + $0x18] sm:$0xff]
  %287 = vrot.lane.b32.xlu0 %v281, 127
  %v288 = vpop.permute.xlu0 %287
  %289 = vrot.lane.b32.xlu0 %v282, 127
  %v290 = vpop.permute.xlu0 %289
  %291 = vrot.lane.b32.xlu0 %v283, 127
  %v292 = vpop.permute.xlu0 %291
  %v293 = vsel %vm64, %v288, %v290
  %v294 = vsel %vm64, %v290, %v292
  %297 = vst [vmem:[#allocation4 + $0x50] sm:$0xff] %v293
  %298 = vst [vmem:[#allocation4 + $0x58] sm:$0xff] %v294
  %v299 = vld [vmem:[#allocation3 + $0x8] sm:$0xff]
  %v300 = vld [vmem:[#allocation3 + $0x10] sm:$0xff]
  %v301 = vld [vmem:[#allocation3 + $0x18] sm:$0xff]
  %305 = vrot.lane.b32.xlu0 %v299, 120
  %v306 = vpop.permute.xlu0 %305
  %307 = vrot.lane.b32.xlu0 %v300, 120
  %v308 = vpop.permute.xlu0 %307
  %309 = vrot.lane.b32.xlu0 %v301, 120
  %v310 = vpop.permute.xlu0 %309
  %vm311 = vcmask 982016
  %v312 = vsel %vm311, %v306, %v308
  %v313 = vsel %vm311, %v308, %v310
  %316 = vst [vmem:[#allocation4 + $0x60] sm:$0xff] %v312
  %317 = vst [vmem:[#allocation4 + $0x68] sm:$0xff] %v313
  %v318 = vld [vmem:[#allocation3 + $0x8] sm:$0xff]
  %v319 = vld [vmem:[#allocation3 + $0x10] sm:$0xff]
  %v320 = vld [vmem:[#allocation3 + $0x18] sm:$0xff]
  %324 = vrot.lane.b32.xlu0 %v318, 119
  %v325 = vpop.permute.xlu0 %324
  %326 = vrot.lane.b32.xlu0 %v319, 119
  %v327 = vpop.permute.xlu0 %326
  %328 = vrot.lane.b32.xlu0 %v320, 119
  %v329 = vpop.permute.xlu0 %328
  %v330 = vsel %vm89, %v325, %v327
  %v331 = vsel %vm89, %v327, %v329
  %334 = vst [vmem:[#allocation4 + $0x70] sm:$0xff] %v330
  %335 = vst [vmem:[#allocation4 + $0x78] sm:$0xff] %v331
  %v336 = vld [vmem:[#allocation3 + $0x8] sm:$0xff]
  %v337 = vld [vmem:[#allocation3 + $0x10] sm:$0xff]
  %v338 = vld [vmem:[#allocation3 + $0x18] sm:$0xff]
  %342 = vrot.lane.b32.xlu0 %v336, 118
  %v343 = vpop.permute.xlu0 %342
  %344 = vrot.lane.b32.xlu0 %v337, 118
  %v345 = vpop.permute.xlu0 %344
  %346 = vrot.lane.b32.xlu0 %v338, 118
  %v347 = vpop.permute.xlu0 %346
  %v348 = vsel %vm114, %v343, %v345
  %v349 = vsel %vm114, %v345, %v347
  %352 = vst [vmem:[#allocation4 + $0x80] sm:$0xff] %v348
  %353 = vst [vmem:[#allocation4 + $0x88] sm:$0xff] %v349
  %v354 = vld [vmem:[%s2] sm:$0xff]
  %v355 = vld [vmem:[%s2 + $0x8] sm:$0xff]
  %v356 = vld [vmem:[#allocation4] sm:$0xff]
  %v357 = vld [vmem:[#allocation4 + $0x8] sm:$0xff]
  %v358 = vld [vmem:[#allocation4 + $0x10] sm:$0xff]
  %v359 = vld [vmem:[#allocation4 + $0x18] sm:$0xff]
  %v360 = vld [vmem:[#allocation4 + $0x20] sm:$0xff]
  %v361 = vld [vmem:[#allocation4 + $0x28] sm:$0xff]
  %v362 = vld [vmem:[#allocation4 + $0x30] sm:$0xff]
  %v363 = vld [vmem:[#allocation4 + $0x38] sm:$0xff]
  %v364 = vld [vmem:[#allocation4 + $0x40] sm:$0xff]
  %v365 = vld [vmem:[#allocation4 + $0x48] sm:$0xff]
  %v366 = vld [vmem:[#allocation4 + $0x50] sm:$0xff]
  %v367 = vld [vmem:[#allocation4 + $0x58] sm:$0xff]
  %v368 = vld [vmem:[#allocation4 + $0x60] sm:$0xff]
  %v369 = vld [vmem:[#allocation4 + $0x68] sm:$0xff]
  %v370 = vld [vmem:[#allocation4 + $0x70] sm:$0xff]
  %v371 = vld [vmem:[#allocation4 + $0x78] sm:$0xff]
  %v372 = vld [vmem:[#allocation4 + $0x80] sm:$0xff]
  %v373 = vld [vmem:[#allocation4 + $0x88] sm:$0xff]
  %vm374 = vcmask 588800
  %v376 = vsel %vm374, %v354, 0
  %v379 = vsel %vm374, %v355, 0
  %381 = vmatpush.msra.mxu0 0.0
  %382 = vmatpush.msra.mxu0 0.0
  %383 = vmatpush.msra.mxu0 0.0
  %384 = vmatpush.msra.mxu0 0.0
  %385 = vmatpush.msra.mxu0 0.0
  %386 = vmatpush.msra.mxu0 0.0
  %387 = vmatpush.msra.mxu0 0.0
  %388 = vmatpush.msra.mxu0 %v372
  %389 = vmatpush.msra.mxu0 %v370
  %390 = vmatpush.msra.mxu0 %v368
  %391 = vmatpush.msra.mxu0 %v366
  %392 = vmatpush.msra.mxu0 %v364
  %393 = vmatpush.msra.mxu0 %v362
  %394 = vmatpush.msra.mxu0 %v360
  %395 = vmatpush.msra.mxu0 %v358
  %396 = vmatpush.msra.mxu0 %v356
  %397 = vmatmul.f32.gmra.mxu0 %v376
  %v398 = vpop.f32.mrf.mxu0
  %v399 = vadd.f32 0.0, %v398
  %400 = vmatmul.f32.gmra.mxu0 %v379
  %v401 = vpop.f32.mrf.mxu0
  %v402 = vadd.f32 0.0, %v401
  %403 = vdwg.mxu0
  %404 = vmatpush.msra.mxu0 0.0
  %405 = vmatpush.msra.mxu0 0.0
  %406 = vmatpush.msra.mxu0 0.0
  %407 = vmatpush.msra.mxu0 0.0
  %408 = vmatpush.msra.mxu0 0.0
  %409 = vmatpush.msra.mxu0 0.0
  %410 = vmatpush.msra.mxu0 0.0
  %411 = vmatpush.msra.mxu0 %v373
  %412 = vmatpush.msra.mxu0 %v371
  %413 = vmatpush.msra.mxu0 %v369
  %414 = vmatpush.msra.mxu0 %v367
  %415 = vmatpush.msra.mxu0 %v365
  %416 = vmatpush.msra.mxu0 %v363
  %417 = vmatpush.msra.mxu0 %v361
  %418 = vmatpush.msra.mxu0 %v359
  %419 = vmatpush.msra.mxu0 %v357
  %420 = vmatmul.f32.gmra.mxu0 %v376
  %v421 = vpop.f32.mrf.mxu0
  %v422 = vadd.f32 0.0, %v421
  %423 = vmatmul.f32.gmra.mxu0 %v379
  %v424 = vpop.f32.mrf.mxu0
  %v425 = vadd.f32 0.0, %v424
  %426 = vdwg.mxu0
  %427 = vst [vmem:[%s4] sm:$0xff] %v399
  %428 = vst [vmem:[%s4 + $0x8] sm:$0xff] %v422
  %429 = vst [vmem:[%s4 + $0x10] sm:$0xff] %v402
  %430 = vst [vmem:[%s4 + $0x18] sm:$0xff] %v425
  %v431 = vmul.f32 %v399, %v193
  %v432 = vmul.f32 %v422, %v194
  %v433 = vmul.f32 %v402, %v193
  %v434 = vmul.f32 %v425, %v194
  %v435 = vadd.f32 %v431, %v432
  %436 = vadd.xlane.f32.xlu0 %v435
  %v437 = vpop.xlane.xlu0 %436
  %v438 = vadd.f32 %v433, %v434
  %439 = vadd.xlane.f32.xlu0 %v438
  %v440 = vpop.xlane.xlu0 %439
  %v441 = vmul.f32 %v431, %v399
  %v442 = vmul.f32 %v432, %v422
  %v443 = vmul.f32 %v433, %v402
  %v444 = vmul.f32 %v434, %v425
  %v445 = vadd.f32 %v441, %v442
  %446 = vadd.xlane.f32.xlu0 %v445
  %v447 = vpop.xlane.xlu0 %446
  %v448 = vadd.f32 %v443, %v444
  %449 = vadd.xlane.f32.xlu0 %v448
  %v450 = vpop.xlane.xlu0 %449
  %v452 = vrot.slane %v437, 4
  %v454 = vadd.f32 %v437, %v452
  %v455 = vadd.f32 %v454, %v440
  %v457 = vrot.slane %v440, 4
  %v459 = vadd.f32 %v455, %v457
  %v461 = vrot.slane %v447, 4
  %v463 = vadd.f32 %v447, %v461
  %v464 = vadd.f32 %v463, %v450
  %v466 = vrot.slane %v450, 4
  %v468 = vadd.f32 %v464, %v466
  %v469 = vmul.f32 %v459, 0.001953125
  %v470 = vmul.f32 %v468, 0.001953125
  %v471 = vmul.f32 %v469, %v469
  %v472 = vsub.f32 %v470, %v471
  %v473 = vmax.f32 %v472, 0.0
  %v474 = vadd.f32 %v473, 1e-05
  %v475 = vrsqrt.pop %v474
  %v476 = vmul.f32 %v475, %v474
  %v477 = vmul.f32 %v476, %v475
  %v478 = vmul.f32 0.5, %v477
  %v479 = vsub.f32 1.5, %v478
  %v480 = vmul.f32 %v475, %v479
  %vm481 = vweird.f32 %v474
  %vm482 = vweird.f32 %v475
  %vm483 = vmor %vm481, %vm482
  %v484 = vsel %vm483, %v475, %v480
  %v486 = vrot.slane %v469, 4
  %vm488 = vcmask 1043456
  %v489 = vsel %vm488, %v469, %v486
  %v491 = vrot.slane %v484, 4
  %v493 = vsel %vm488, %v484, %v491
  %v494 = vld [vmem:[%s4] sm:$0xff]
  %v495 = vld [vmem:[%s4 + $0x8] sm:$0xff]
  %v496 = vld [vmem:[%s4 + $0x10] sm:$0xff]
  %v497 = vld [vmem:[%s4 + $0x18] sm:$0xff]
  %499 = vset.pattern.permute.xlu0 0
  %500 = vperm.xlu0 %499, %v489
  %v501 = vpop.permute.xlu0 %500
  %v503 = vsub.f32 %v494, %v501
  %v504 = vsub.f32 %v495, %v501
  %v505 = vsub.f32 %v496, %v501
  %v506 = vsub.f32 %v497, %v501
  %508 = vset.pattern.permute.xlu0 0
  %509 = vperm.xlu0 %508, %v493
  %v510 = vpop.permute.xlu0 %509
  %v512 = vmul.f32 %v503, %v510
  %v513 = vmul.f32 %v504, %v510
  %v514 = vmul.f32 %v505, %v510
  %v515 = vmul.f32 %v506, %v510
  %516 = vst [vmem:[%s4] sm:$0xff] %v512
  %517 = vst [vmem:[%s4 + $0x8] sm:$0xff] %v513
  %518 = vst [vmem:[%s4 + $0x10] sm:$0xff] %v514
  %519 = vst [vmem:[%s4 + $0x18] sm:$0xff] %v515
  // Predicated region
  $region18: #{unet_block_innermost.1} parent=0 // pred_check
    _
  $region19: #{unet_block_innermost.1} parent=0 // pred_check_branch
    %521 = sbr.rel (0) target = $region21
  $region20: #{unet_block_innermost.1} parent=0 // pred_region
    _
  $region21: #{unet_block_innermost.1} parent=0 // pred_fallthru
    _
  // Predicated region
  $region22: #{unet_block_innermost.1} parent=0 // pred_check
    _
  $region23: #{unet_block_innermost.1} parent=0 // pred_check_branch
    %523 = sbr.rel (0) target = $region25
  $region24: #{unet_block_innermost.1} parent=0 // pred_region
    _
  $region25: #{unet_block_innermost.1} parent=0 // pred_fallthru
    _

</llo_original>
